<compile_context>
chip_gen: v7x
topology: tpu7x:2x2x1
jax: 0.10.0
libtpu: 0.0.40
codegen_flags: <defaults>
</compile_context>

<pallas_src>
import functools

import jax
import jax.numpy as jnp
from jax.experimental import pallas as pl
from jax.experimental.pallas import tpu as pltpu


def _round_up(v, m):
    return (v + m - 1) // m * m


# ----------------------------------------------------------------------------
# Pallas kernel
# ----------------------------------------------------------------------------
def _dw_sep_kernel(x_ref, wtap_ref, scale_ref, shift_ref, wpw_ref, bpw_ref,
                   o_ref, acc_ref, *, nd, n_phases, out_h, out_w):
    """One grid step = one stride-phase slice of one batch element.

    grid = (batch [parallel], s*s phases [arbitrary, reduction])

    x_ref     : (1, 1, Hs, Ws, Cin)   resident stride-phase slice of the padded input
    wtap_ref  : (1, nd*nd, Cin)       this phase's tap-major depthwise weights
    scale_ref : (1, 1, Cin)           folded BatchNorm scale  (gamma / sqrt(var+eps))
    shift_ref : (1, 1, Cin)           folded BatchNorm shift  (incl. depthwise bias)
    wpw_ref   : (Cin, Cout_p)         1x1 pointwise conv weight, Cout padded to 128
    bpw_ref   : (1, Cout_p)           pointwise conv bias (padded)
    o_ref     : (1, Ho*Wo, Cout_p)    output block, written once at the last phase
    acc_ref   : (Ho, Wo, Cin) f32     depthwise accumulator (VMEM scratch)
    """
    ph = pl.program_id(1)

    @pl.when(ph == 0)
    def _init():
        acc_ref[...] = jnp.zeros_like(acc_ref)

    # All nd*nd taps of this phase, unrolled at trace time: static window offsets and
    # static weight rows (no dynamic sublane slicing, no per-tap grid overhead).
    part = None
    for t in range(nd * nd):
        di, dj = t // nd, t % nd
        win = x_ref[0, 0, pl.ds(di, out_h), pl.ds(dj, out_w), :]   # (Ho, Wo, Cin)
        w_t = wtap_ref[pl.ds(0, 1), pl.ds(t, 1), :]                # (1, 1, Cin)
        contrib = win * w_t
        part = contrib if part is None else part + contrib
    acc_ref[...] += part

    @pl.when(ph == n_phases - 1)
    def _finalize():
        # folded BatchNorm (+ depthwise bias), then the fused 1x1 conv (MXU) + bias.
        z = acc_ref[...] * scale_ref[...] + shift_ref[...]
        z2 = z.reshape(out_h * out_w, z.shape[-1])
        out = jnp.dot(z2.astype(wpw_ref.dtype), wpw_ref[...],
                      preferred_element_type=jnp.float32)
        o_ref[0] = out + bpw_ref[...]                              # lane-dense store


# ----------------------------------------------------------------------------
# Wrapper: layout plumbing (phase decomposition, weight folding) + pallas_call
# ----------------------------------------------------------------------------
def depthwise_conv2d_forward(x, params, *, kernel_size, padding, stride,
                             bn_eps=1e-5, use_bf16=True):
    """Forward of: Conv2d(groups=Cin, k, pad, stride, bias) -> BN2d(eval) -> Conv2d(1x1, bias)."""
    k, p, s = kernel_size, padding, stride
    b, c_in, h, w = x.shape
    c_out = params["w_pw"].shape[0]

    ho = (h + 2 * p - k) // s + 1
    wo = (w + 2 * p - k) // s + 1
    nd = (k - 1) // s + 1                 # taps per stride-phase along one axis
    nd2 = nd * nd
    hs, ws = ho + nd - 1, wo + nd - 1     # phase-slice spatial extent
    n_phases = s * s

    # ---- single layout pass: zero-pad + NCHW -> phase-split NHWC (no k^2 expansion)
    pad_b = max(0, s * hs - (h + p))
    pad_r = max(0, s * ws - (w + p))
    xp = jnp.pad(x, ((0, 0), (0, 0), (p, pad_b), (p, pad_r)))
    xp = xp[:, :, : s * hs, : s * ws]
    if s == 1:
        # phase pass is the identity: only the unavoidable NCHW->NHWC relayout remains.
        phases = jnp.transpose(xp, (0, 2, 3, 1))[None]             # (1, B, Hs, Ws, Cin)
    else:
        # one fused pad/reshape/transpose chain; flat phase index = pi*s + pj
        phases = (xp.reshape(b, c_in, hs, s, ws, s)
                    .transpose(3, 5, 0, 2, 4, 1)
                    .reshape(n_phases, b, hs, ws, c_in))           # (s^2, B, Hs, Ws, Cin)

    # ---- tap-major depthwise weights, padded to the (phase, dy, dx) enumeration
    w_dw = jnp.transpose(params["w_dw"][:, 0, :, :], (1, 2, 0))    # (k, k, Cin)
    t_idx = jnp.arange(n_phases * nd2)
    ph_i, rem = t_idx // nd2, t_idx % nd2
    pi, pj = ph_i // s, ph_i % s
    di, dj = rem // nd, rem % nd
    ii, jj = di * s + pi, dj * s + pj
    valid = (ii < k) & (jj < k)
    w_tap = jnp.where(valid[:, None],
                      w_dw[jnp.clip(ii, 0, k - 1), jnp.clip(jj, 0, k - 1), :],
                      0.0).astype(jnp.float32).reshape(n_phases, nd2, c_in)

    # ---- fold BatchNorm(eval) + depthwise bias into a per-channel scale/shift
    scale = params["bn_gamma"] / jnp.sqrt(params["bn_var"] + bn_eps)
    shift = (params["b_dw"] - params["bn_mean"]) * scale + params["bn_beta"]
    scale3 = scale.reshape(1, 1, c_in).astype(jnp.float32)
    shift3 = shift.reshape(1, 1, c_in).astype(jnp.float32)

    # ---- pointwise 1x1 conv weights/bias, Cout zero-padded to a multiple of 128
    #      (lane-dense output store + full MXU N tile); pad columns sliced off below.
    c_out_p = _round_up(c_out, 128)
    w_pw = jnp.transpose(params["w_pw"][:, :, 0, 0], (1, 0))       # (Cin, Cout)
    w_pw = jnp.pad(w_pw, ((0, 0), (0, c_out_p - c_out)))
    w_pw = w_pw.astype(jnp.bfloat16 if use_bf16 else jnp.float32)
    b_pw = jnp.pad(params["b_pw"], (0, c_out_p - c_out)).reshape(1, c_out_p)
    b_pw = b_pw.astype(jnp.float32)

    # ---- VMEM budget (double-buffered blocks + scratch), capped at 40 MiB (v7x-safe)
    ci_l = _round_up(c_in, 128)
    vmem_need = 4 * (
        2 * hs * _round_up(ws, 8) * ci_l              # input phase block (x2 buffers)
        + 2 * _round_up(ho * wo, 8) * c_out_p         # output block (x2 buffers)
        + ho * _round_up(wo, 8) * ci_l                # acc scratch
        + 2 * (_round_up(nd2, 8) * ci_l               # invariant operands (tiny; still
               + 2 * ci_l                             #  double-buffered by default)
               + _round_up(c_in, 8) * c_out_p
               + 8 * c_out_p))
    vmem_limit = int(min(max(2 * vmem_need, 16 * 1024 * 1024), 40 * 1024 * 1024))

    # ---- advisory cost estimate so XLA schedules the layout ops around the call
    flops = int(2 * b * ho * wo * (n_phases * nd2 * c_in + c_in * c_out_p))
    bytes_accessed = int(4 * (phases.size + w_tap.size + 2 * c_in
                              + c_in * c_out_p + c_out_p + b * ho * wo * c_out_p))
    cost = pl.CostEstimate(flops=flops, transcendentals=0,
                           bytes_accessed=bytes_accessed)

    kernel = functools.partial(_dw_sep_kernel, nd=nd, n_phases=n_phases,
                               out_h=ho, out_w=wo)
    out_flat = pl.pallas_call(
        kernel,
        out_shape=jax.ShapeDtypeStruct((b, ho * wo, c_out_p), jnp.float32),
        grid=(b, n_phases),
        in_specs=[
            # phase slice: the input is DMA'd from HBM exactly once over the grid
            pl.BlockSpec((1, 1, hs, ws, c_in), lambda bi, ph: (ph, bi, 0, 0, 0)),
            pl.BlockSpec((1, nd2, c_in), lambda bi, ph: (ph, 0, 0)),
            pl.BlockSpec((1, 1, c_in), lambda bi, ph: (0, 0, 0)),
            pl.BlockSpec((1, 1, c_in), lambda bi, ph: (0, 0, 0)),
            pl.BlockSpec((c_in, c_out_p), lambda bi, ph: (0, 0)),
            pl.BlockSpec((1, c_out_p), lambda bi, ph: (0, 0)),
        ],
        out_specs=pl.BlockSpec((1, ho * wo, c_out_p), lambda bi, ph: (bi, 0, 0)),
        scratch_shapes=[pltpu.VMEM((ho, wo, c_in), jnp.float32)],
        compiler_params=pltpu.CompilerParams(
            dimension_semantics=("parallel", "arbitrary"),
            vmem_limit_bytes=vmem_limit,
        ),
        cost_estimate=cost,
    )(phases, w_tap, scale3, shift3, w_pw, b_pw)

    out = out_flat[:, :, :c_out].reshape(b, ho, wo, c_out)
    return jnp.transpose(out, (0, 3, 1, 2))


# ----------------------------------------------------------------------------
# Pure-JAX reference (for a correctness smoke test)
# ----------------------------------------------------------------------------
def depthwise_conv2d_ref(x, params, kernel_size, padding, stride, bn_eps=1e-5):
    k, p, s = kernel_size, padding, stride
    dn = ("NCHW", "OIHW", "NCHW")
    y = jax.lax.conv_general_dilated(
        x, params["w_dw"], window_strides=(s, s), padding=[(p, p), (p, p)],
        feature_group_count=x.shape[1], dimension_numbers=dn)
    y = y + params["b_dw"][None, :, None, None]
    inv = params["bn_gamma"] / jnp.sqrt(params["bn_var"] + bn_eps)
    y = ((y - params["bn_mean"][None, :, None, None]) * inv[None, :, None, None]
         + params["bn_beta"][None, :, None, None])
    y = jax.lax.conv_general_dilated(
        y, params["w_pw"], window_strides=(1, 1), padding=[(0, 0), (0, 0)],
        dimension_numbers=dn)
    return y + params["b_pw"][None, :, None, None]


# ----------------------------------------------------------------------------
# Deterministic parameter construction (PyTorch module shapes)
# ----------------------------------------------------------------------------
def make_params(key, c_in, c_out, k):
    ks = jax.random.split(key, 8)

    def n(kk, shape, std):
        return std * jax.random.normal(kk, shape, dtype=jnp.float32)

    return dict(
        w_dw=n(ks[0], (c_in, 1, k, k), 0.2),            # depthwise Conv2d weight
        b_dw=n(ks[1], (c_in,), 0.1),                    # depthwise Conv2d bias
        bn_gamma=1.0 + n(ks[2], (c_in,), 0.1),
        bn_beta=n(ks[3], (c_in,), 0.1),
        bn_mean=n(ks[4], (c_in,), 0.1),
        bn_var=0.5 + jnp.abs(n(ks[5], (c_in,), 0.2)),
        w_pw=n(ks[6], (c_out, c_in, 1, 1), 0.2),        # 1x1 Conv2d weight
        b_pw=n(ks[7], (c_out,), 0.1),                   # 1x1 Conv2d bias
    )


# ----------------------------------------------------------------------------
# Main
# ----------------------------------------------------------------------------
if __name__ == "__main__":
    root = jax.random.PRNGKey(0)
    B, C_IN, H, W, C_OUT = 2, 4, 16, 16, 32

    kx, kp = jax.random.split(root)
    x = jax.random.normal(kx, (B, C_IN, H, W), dtype=jnp.float32)

    configs = [
        dict(k=3, p=1, s=2, use_bf16=True),    # CvT to_kv-style strided projection
        dict(k=3, p=1, s=1, use_bf16=False),   # CvT to_q-style stride-1 projection
    ]

    for idx, cfg in enumerate(configs):
        params = make_params(jax.random.fold_in(kp, idx), C_IN, C_OUT, cfg["k"])
        fwd = jax.jit(functools.partial(
            depthwise_conv2d_forward, kernel_size=cfg["k"], padding=cfg["p"],
            stride=cfg["s"], use_bf16=cfg["use_bf16"]))
        out = jax.block_until_ready(fwd(x, params))
        ref = depthwise_conv2d_ref(x, params, cfg["k"], cfg["p"], cfg["s"])

        assert out.shape == ref.shape, (out.shape, ref.shape)
        assert bool(jnp.all(jnp.isfinite(out)))
        max_err = float(jnp.max(jnp.abs(out - ref)))
        ref_scale = float(jnp.max(jnp.abs(ref)))
        rel_tol = 0.03 if cfg["use_bf16"] else 0.01   # bf16 MXU operands vs f32
        assert max_err <= rel_tol * ref_scale + 1e-4, (idx, max_err, ref_scale)

    print("KERNEL_OK")
</pallas_src>

<mosaic_0001>
module attributes {stable_mosaic.version = 11 : i64} {
  func.func @_dw_sep_kernel(%arg0: i32, %arg1: i32, %arg2: memref<1x1x9x9x4xf32, #tpu.memory_space<vmem>>, %arg3: memref<1x4x4xf32, #tpu.memory_space<vmem>>, %arg4: memref<1x1x4xf32, #tpu.memory_space<vmem>>, %arg5: memref<1x1x4xf32, #tpu.memory_space<vmem>>, %arg6: memref<4x128xbf16, #tpu.memory_space<vmem>>, %arg7: memref<1x128xf32, #tpu.memory_space<vmem>>, %arg8: memref<1x64x128xf32, #tpu.memory_space<vmem>>, %arg9: memref<8x8x4xf32, #tpu.memory_space<vmem>>) attributes {dimension_semantics = [#tpu.dimension_semantics<parallel>, #tpu.dimension_semantics<arbitrary>], iteration_bounds = array<i64: 2, 4>, scalar_prefetch = 0 : i64, scratch_operands = 1 : i64, tpu.core_type = #tpu.core_type<tc>, window_params = [{transform_indices = @transform_0, window_bounds = array<i64: 1, 1, 9, 9, 4>}, {transform_indices = @transform_1, window_bounds = array<i64: 1, 4, 4>}, {pipeline_mode = #tpu.pipeline_mode<synchronous>, transform_indices = @transform_2, window_bounds = array<i64: 1, 1, 4>}, {pipeline_mode = #tpu.pipeline_mode<synchronous>, transform_indices = @transform_3, window_bounds = array<i64: 1, 1, 4>}, {pipeline_mode = #tpu.pipeline_mode<synchronous>, transform_indices = @transform_4, window_bounds = array<i64: 4, 128>}, {pipeline_mode = #tpu.pipeline_mode<synchronous>, transform_indices = @transform_5, window_bounds = array<i64: 1, 128>}, {transform_indices = @transform_6, window_bounds = array<i64: 1, 64, 128>}]} {
    %c0_i32 = arith.constant 0 : i32
    %0 = arith.cmpi eq, %arg1, %c0_i32 : i32
    %1 = arith.extui %0 : i1 to i32
    %c0_i32_0 = arith.constant 0 : i32
    %2 = arith.cmpi ne, %1, %c0_i32_0 : i32
    scf.if %2 {
      %cst = arith.constant 0.000000e+00 : f32
      %32 = vector.broadcast %cst : f32 to vector<8x8x4xf32>
      %c0_36 = arith.constant 0 : index
      %c0_37 = arith.constant 0 : index
      %c0_38 = arith.constant 0 : index
      %33 = vector.load %arg9[%c0_36, %c0_37, %c0_38] : memref<8x8x4xf32, #tpu.memory_space<vmem>>, vector<8x8x4xf32>
      tpu.vector_store %arg9[%c0_36, %c0_37, %c0_38], %32 {strides = array<i32>} : memref<8x8x4xf32, #tpu.memory_space<vmem>>, vector<8x8x4xf32>,
    } else {
    }
    %c0 = arith.constant 0 : index
    %c0_1 = arith.constant 0 : index
    %c0_2 = arith.constant 0 : index
    %c0_3 = arith.constant 0 : index
    %c0_4 = arith.constant 0 : index
    %3 = vector.load %arg2[%c0, %c0_1, %c0_2, %c0_3, %c0_4] : memref<1x1x9x9x4xf32, #tpu.memory_space<vmem>>, vector<1x1x8x8x4xf32>
    %4 = vector.shape_cast %3 : vector<1x1x8x8x4xf32> to vector<8x8x4xf32>
    %c0_5 = arith.constant 0 : index
    %c0_6 = arith.constant 0 : index
    %c0_7 = arith.constant 0 : index
    %5 = vector.load %arg3[%c0_5, %c0_6, %c0_7] : memref<1x4x4xf32, #tpu.memory_space<vmem>>, vector<1x1x4xf32>
    %6 = vector.broadcast %5 : vector<1x1x4xf32> to vector<8x8x4xf32>
    %7 = arith.mulf %4, %6 : vector<8x8x4xf32>
    %c0_8 = arith.constant 0 : index
    %c0_9 = arith.constant 0 : index
    %c0_10 = arith.constant 0 : index
    %c1 = arith.constant 1 : index
    %c0_11 = arith.constant 0 : index
    %8 = vector.load %arg2[%c0_8, %c0_9, %c0_10, %c1, %c0_11] : memref<1x1x9x9x4xf32, #tpu.memory_space<vmem>>, vector<1x1x8x8x4xf32>
    %9 = vector.shape_cast %8 : vector<1x1x8x8x4xf32> to vector<8x8x4xf32>
    %c0_12 = arith.constant 0 : index
    %c1_13 = arith.constant 1 : index
    %c0_14 = arith.constant 0 : index
    %10 = vector.load %arg3[%c0_12, %c1_13, %c0_14] : memref<1x4x4xf32, #tpu.memory_space<vmem>>, vector<1x1x4xf32>
    %11 = vector.broadcast %10 : vector<1x1x4xf32> to vector<8x8x4xf32>
    %12 = arith.mulf %9, %11 : vector<8x8x4xf32>
    %13 = arith.addf %7, %12 : vector<8x8x4xf32>
    %c0_15 = arith.constant 0 : index
    %c0_16 = arith.constant 0 : index
    %c1_17 = arith.constant 1 : index
    %c0_18 = arith.constant 0 : index
    %c0_19 = arith.constant 0 : index
    %14 = vector.load %arg2[%c0_15, %c0_16, %c1_17, %c0_18, %c0_19] : memref<1x1x9x9x4xf32, #tpu.memory_space<vmem>>, vector<1x1x8x8x4xf32>
    %15 = vector.shape_cast %14 : vector<1x1x8x8x4xf32> to vector<8x8x4xf32>
    %c0_20 = arith.constant 0 : index
    %c2 = arith.constant 2 : index
    %c0_21 = arith.constant 0 : index
    %16 = vector.load %arg3[%c0_20, %c2, %c0_21] : memref<1x4x4xf32, #tpu.memory_space<vmem>>, vector<1x1x4xf32>
    %17 = vector.broadcast %16 : vector<1x1x4xf32> to vector<8x8x4xf32>
    %18 = arith.mulf %15, %17 : vector<8x8x4xf32>
    %19 = arith.addf %13, %18 : vector<8x8x4xf32>
    %c0_22 = arith.constant 0 : index
    %c0_23 = arith.constant 0 : index
    %c1_24 = arith.constant 1 : index
    %c1_25 = arith.constant 1 : index
    %c0_26 = arith.constant 0 : index
    %20 = vector.load %arg2[%c0_22, %c0_23, %c1_24, %c1_25, %c0_26] : memref<1x1x9x9x4xf32, #tpu.memory_space<vmem>>, vector<1x1x8x8x4xf32>
    %21 = vector.shape_cast %20 : vector<1x1x8x8x4xf32> to vector<8x8x4xf32>
    %c0_27 = arith.constant 0 : index
    %c3 = arith.constant 3 : index
    %c0_28 = arith.constant 0 : index
    %22 = vector.load %arg3[%c0_27, %c3, %c0_28] : memref<1x4x4xf32, #tpu.memory_space<vmem>>, vector<1x1x4xf32>
    %23 = vector.broadcast %22 : vector<1x1x4xf32> to vector<8x8x4xf32>
    %24 = arith.mulf %21, %23 : vector<8x8x4xf32>
    %25 = arith.addf %19, %24 : vector<8x8x4xf32>
    %c0_29 = arith.constant 0 : index
    %c0_30 = arith.constant 0 : index
    %c0_31 = arith.constant 0 : index
    %26 = vector.load %arg9[%c0_29, %c0_30, %c0_31] : memref<8x8x4xf32, #tpu.memory_space<vmem>>, vector<8x8x4xf32>
    %27 = arith.addf %26, %25 : vector<8x8x4xf32>
    %c0_32 = arith.constant 0 : index
    %c0_33 = arith.constant 0 : index
    %c0_34 = arith.constant 0 : index
    %28 = vector.load %arg9[%c0_32, %c0_33, %c0_34] : memref<8x8x4xf32, #tpu.memory_space<vmem>>, vector<8x8x4xf32>
    tpu.vector_store %arg9[%c0_32, %c0_33, %c0_34], %27 {strides = array<i32>} : memref<8x8x4xf32, #tpu.memory_space<vmem>>, vector<8x8x4xf32>,
    %c3_i32 = arith.constant 3 : i32
    %29 = arith.cmpi eq, %arg1, %c3_i32 : i32
    %30 = arith.extui %29 : i1 to i32
    %c0_i32_35 = arith.constant 0 : i32
    %31 = arith.cmpi ne, %30, %c0_i32_35 : i32
    scf.if %31 {
      %c0_36 = arith.constant 0 : index
      %c0_37 = arith.constant 0 : index
      %c0_38 = arith.constant 0 : index
      %32 = vector.load %arg9[%c0_36, %c0_37, %c0_38] : memref<8x8x4xf32, #tpu.memory_space<vmem>>, vector<8x8x4xf32>
      %c0_39 = arith.constant 0 : index
      %c0_40 = arith.constant 0 : index
      %c0_41 = arith.constant 0 : index
      %33 = vector.load %arg4[%c0_39, %c0_40, %c0_41] : memref<1x1x4xf32, #tpu.memory_space<vmem>>, vector<1x1x4xf32>
      %34 = vector.broadcast %33 : vector<1x1x4xf32> to vector<8x8x4xf32>
      %35 = arith.mulf %32, %34 : vector<8x8x4xf32>
      %c0_42 = arith.constant 0 : index
      %c0_43 = arith.constant 0 : index
      %c0_44 = arith.constant 0 : index
      %36 = vector.load %arg5[%c0_42, %c0_43, %c0_44] : memref<1x1x4xf32, #tpu.memory_space<vmem>>, vector<1x1x4xf32>
      %37 = vector.broadcast %36 : vector<1x1x4xf32> to vector<8x8x4xf32>
      %38 = arith.addf %35, %37 : vector<8x8x4xf32>
      %39 = vector.shape_cast %38 : vector<8x8x4xf32> to vector<64x4xf32>
      %40 = arith.truncf %39 : vector<64x4xf32> to vector<64x4xbf16>
      %c0_45 = arith.constant 0 : index
      %c0_46 = arith.constant 0 : index
      %41 = vector.load %arg6[%c0_45, %c0_46] : memref<4x128xbf16, #tpu.memory_space<vmem>>, vector<4x128xbf16>
      %cst = arith.constant dense<0.000000e+00> : vector<64x128xf32>
      %42 = tpu.matmul %40, %41, %cst {dimension_numbers = #tpu.dot_dimension_numbers<[1], [0], [0], [1], [0, 0, 1, 1], [], []>} : vector<64x4xbf16>, vector<4x128xbf16>, vector<64x128xf32> -> vector<64x128xf32>
      %c0_47 = arith.constant 0 : index
      %c0_48 = arith.constant 0 : index
      %43 = vector.load %arg7[%c0_47, %c0_48] : memref<1x128xf32, #tpu.memory_space<vmem>>, vector<1x128xf32>
      %44 = vector.broadcast %43 : vector<1x128xf32> to vector<64x128xf32>
      %45 = arith.addf %42, %44 : vector<64x128xf32>
      %c0_49 = arith.constant 0 : index
      %c0_50 = arith.constant 0 : index
      %c0_51 = arith.constant 0 : index
      %46 = vector.load %arg8[%c0_49, %c0_50, %c0_51] : memref<1x64x128xf32, #tpu.memory_space<vmem>>, vector<1x64x128xf32>
      %47 = vector.shape_cast %46 : vector<1x64x128xf32> to vector<64x128xf32>
      %48 = vector.shape_cast %45 : vector<64x128xf32> to vector<1x64x128xf32>
      tpu.vector_store %arg8[%c0_49, %c0_50, %c0_51], %48 {strides = array<i32>} : memref<1x64x128xf32, #tpu.memory_space<vmem>>, vector<1x64x128xf32>,
    } else {
    }
    return
  }
  func.func @transform_0(%arg0: i32, %arg1: i32) -> (i32, i32, i32, i32, i32) {
    %c0_i32 = arith.constant 0 : i32
    %c0_i32_0 = arith.constant 0 : i32
    %c0_i32_1 = arith.constant 0 : i32
    %c0_i32_2 = arith.constant 0 : i32
    return %arg1, %arg0, %c0_i32, %c0_i32_0, %c0_i32_1 : i32, i32, i32, i32, i32
  }
  func.func @transform_1(%arg0: i32, %arg1: i32) -> (i32, i32, i32) {
    %c0_i32 = arith.constant 0 : i32
    %c0_i32_0 = arith.constant 0 : i32
    %c0_i32_1 = arith.constant 0 : i32
    return %arg1, %c0_i32, %c0_i32_0 : i32, i32, i32
  }
  func.func @transform_2(%arg0: i32, %arg1: i32) -> (i32, i32, i32) {
    %c0_i32 = arith.constant 0 : i32
    %c0_i32_0 = arith.constant 0 : i32
    %c0_i32_1 = arith.constant 0 : i32
    %c0_i32_2 = arith.constant 0 : i32
    return %c0_i32, %c0_i32_0, %c0_i32_1 : i32, i32, i32
  }
  func.func @transform_3(%arg0: i32, %arg1: i32) -> (i32, i32, i32) {
    %c0_i32 = arith.constant 0 : i32
    %c0_i32_0 = arith.constant 0 : i32
    %c0_i32_1 = arith.constant 0 : i32
    %c0_i32_2 = arith.constant 0 : i32
    return %c0_i32, %c0_i32_0, %c0_i32_1 : i32, i32, i32
  }
  func.func @transform_4(%arg0: i32, %arg1: i32) -> (i32, i32) {
    %c0_i32 = arith.constant 0 : i32
    %c0_i32_0 = arith.constant 0 : i32
    %c0_i32_1 = arith.constant 0 : i32
    return %c0_i32, %c0_i32_0 : i32, i32
  }
  func.func @transform_5(%arg0: i32, %arg1: i32) -> (i32, i32) {
    %c0_i32 = arith.constant 0 : i32
    %c0_i32_0 = arith.constant 0 : i32
    %c0_i32_1 = arith.constant 0 : i32
    return %c0_i32, %c0_i32_0 : i32, i32
  }
  func.func @transform_6(%arg0: i32, %arg1: i32) -> (i32, i32, i32) {
    %c0_i32 = arith.constant 0 : i32
    %c0_i32_0 = arith.constant 0 : i32
    %c0_i32_1 = arith.constant 0 : i32
    return %arg0, %c0_i32, %c0_i32_0 : i32, i32, i32
  }
}

</mosaic_0001>

<llo_original>
// kernel: depthwise_conv2d_forward.1
$region0: #{depthwise_conv2d_forward.1}
  #allocation0 [shape = 'u32[]', space=smem, size = 0x4, offset = 0x4, fixed_abs, tag = 'smem constant byte address 0x4 - core index']
  #allocation1 [shape = 'u32[144,128]{1,0:T(1,128)}', space=vmem, size = 0x12000, scoped, tag = 'internal scratch']
  #allocation2 [shape = 'f32[8,8,4]{2,1,0:T(8,128)}', space=vmem, size = 0x8000, scoped, tag = 'scratch operand']
  %s0 = inlined_call_operand.vmem [shape: f32[4,2,9,9,4], index: 0, kind: input, shape index: {}]
  %s1 = inlined_call_operand.vmem [shape: f32[4,4,4], index: 1, kind: input, shape index: {}]
  %s2 = inlined_call_operand.vmem [shape: f32[1,1,4], index: 2, kind: input, shape index: {}]
  %s3 = inlined_call_operand.vmem [shape: f32[1,1,4], index: 3, kind: input, shape index: {}]
  %s4 = inlined_call_operand.vmem [shape: bf16[4,128], index: 4, kind: input, shape index: {}]
  %s5 = inlined_call_operand.vmem [shape: f32[1,128], index: 5, kind: input, shape index: {}]
  %s6 = inlined_call_operand.vmem [shape: f32[2,64,128], index: 6, kind: output, shape index: {}]
  %s7 = sld [smem:[#allocation0]]
  $region65: #{depthwise_conv2d_forward.1} parent=0
    _
  %s9 = ssub.s32 1, %s7
  %s10 = scalar_select 0, %s9, %s7
  loop: start=0, step=1, limit=10
  $region2: #{depthwise_conv2d_forward.1} parent=0 // loop_pre_header
    _
  $region3: #{depthwise_conv2d_forward.1} parent=0 // loop_header
    %s12 = sphi 0, %s16
    %p13 = scmp.ge.s32.totalorder %s12, 10
    %s19 = sphi 0, %s31
    %s20 = sphi 0, %s27
    %s21 = sphi 0, %s19
    %s22 = sphi 0, %s20
    %s23 = sphi 0, %s21
    %s24 = sphi 0, %s22
    %s36 = sphi 0, %s38
    %s39 = sphi 0, %s36
    %s40 = sphi 0, %s39
    %s56 = sphi 0, %s40
    %s62 = sphi 0, %s64
    %s65 = sphi 0, %s62
    %s66 = sphi 0, %s65
    %s82 = sphi 0, %s66
    %s86 = sphi 0, %s86
    %s88 = sphi 0, %s86
    %s89 = sphi 0, %s88
    %s103 = sphi 0, %s89
    %s107 = sphi 0, %s107
    %s109 = sphi 0, %s107
    %s110 = sphi 0, %s109
    %s124 = sphi 0, %s110
    %s128 = sphi 0, %s128
    %s130 = sphi 0, %s128
    %s131 = sphi 0, %s130
    %s145 = sphi 0, %s131
    %s149 = sphi 0, %s149
    %s151 = sphi 0, %s149
    %s152 = sphi 0, %s151
    %s166 = sphi 0, %s152
    %s172 = sphi 0, %s174
    %s175 = sphi 0, %s172
    %s176 = sphi 0, %s175
    %s192 = sphi 0, %s176
  $region4: #{depthwise_conv2d_forward.1} parent=0 // loop_header_branch
    %15 = sbr.rel (%p13) target = $region8
  $region5: #{depthwise_conv2d_forward.1} parent=0 // loop_body
    %s17 = ssub.s32 %s12, 1
    %s18 = ssub.s32 %s12, 2
    %s25 = sadd.s32 1, %s20
    %p26 = scmp.ge.s32.totalorder %s25, 4
    %s27 = scalar_select %p26, 0, %s25
    %s28 = sadd.s32 1, %s19
    %s29 = scalar_select %p26, %s28, %s19
    %p30 = scmp.ge.s32.totalorder %s29, 2
    %s31 = scalar_select %p30, 0, %s29
    %s32 = ssub.s32 %s20, %s27
    %s33 = ssub.s32 %s19, %s31
    %s34 = sor.u32 %s32, %s33
    %p35 = scmp.eq.s32.totalorder %s34, 0
    %s37 = sadd.s32 %s36, 1
    %s38 = scalar_select %p35, %s36, %s37
    %p41 = pneg %p35
    %p42 = scmp.eq.s32.totalorder %s12, 7
    %p43 = por %p41, %p42
    %p44 = scmp.ne.s32.totalorder %s36, %s39
    %p45 = scmp.eq.s32.totalorder %s12, 0
    %p46 = por %p44, %p45
    %p47 = scmp.ne.s32.totalorder %s36, %s39
    %p48 = scmp.eq.s32.totalorder %s17, 7
    %p49 = por %p47, %p48
    %p50 = scmp.ne.s32.totalorder %s39, %s40
    %p51 = scmp.eq.s32.totalorder %s17, 0
    %p52 = por %p50, %p51
    %p53 = scmp.ne.s32.totalorder %s39, %s40
    %p54 = scmp.eq.s32.totalorder %s18, 7
    %p55 = por %p53, %p54
    %p57 = scmp.ne.s32.totalorder %s40, %s56
    %p58 = scmp.eq.s32.totalorder %s18, 0
    %p59 = por %p57, %p58
    %s60 = ssub.s32 %s20, %s27
    %p61 = scmp.eq.s32.totalorder %s60, 0
    %s63 = sadd.s32 %s62, 1
    %s64 = scalar_select %p61, %s62, %s63
    %p67 = pneg %p61
    %p68 = scmp.eq.s32.totalorder %s12, 7
    %p69 = por %p67, %p68
    %p70 = scmp.ne.s32.totalorder %s62, %s65
    %p71 = scmp.eq.s32.totalorder %s12, 0
    %p72 = por %p70, %p71
    %p73 = scmp.ne.s32.totalorder %s62, %s65
    %p74 = scmp.eq.s32.totalorder %s17, 7
    %p75 = por %p73, %p74
    %p76 = scmp.ne.s32.totalorder %s65, %s66
    %p77 = scmp.eq.s32.totalorder %s17, 0
    %p78 = por %p76, %p77
    %p79 = scmp.ne.s32.totalorder %s65, %s66
    %p80 = scmp.eq.s32.totalorder %s18, 7
    %p81 = por %p79, %p80
    %p83 = scmp.ne.s32.totalorder %s66, %s82
    %p84 = scmp.eq.s32.totalorder %s18, 0
    %p85 = por %p83, %p84
    %s87 = sadd.s32 %s86, 1
    %p90 = scmp.eq.s32.totalorder %s12, 7
    %p91 = scmp.ne.s32.totalorder %s86, %s88
    %p92 = scmp.eq.s32.totalorder %s12, 0
    %p93 = por %p91, %p92
    %p94 = scmp.ne.s32.totalorder %s86, %s88
    %p95 = scmp.eq.s32.totalorder %s17, 7
    %p96 = por %p94, %p95
    %p97 = scmp.ne.s32.totalorder %s88, %s89
    %p98 = scmp.eq.s32.totalorder %s17, 0
    %p99 = por %p97, %p98
    %p100 = scmp.ne.s32.totalorder %s88, %s89
    %p101 = scmp.eq.s32.totalorder %s18, 7
    %p102 = por %p100, %p101
    %p104 = scmp.ne.s32.totalorder %s89, %s103
    %p105 = scmp.eq.s32.totalorder %s18, 0
    %p106 = por %p104, %p105
    %s108 = sadd.s32 %s107, 1
    %p111 = scmp.eq.s32.totalorder %s12, 7
    %p112 = scmp.ne.s32.totalorder %s107, %s109
    %p113 = scmp.eq.s32.totalorder %s12, 0
    %p114 = por %p112, %p113
    %p115 = scmp.ne.s32.totalorder %s107, %s109
    %p116 = scmp.eq.s32.totalorder %s17, 7
    %p117 = por %p115, %p116
    %p118 = scmp.ne.s32.totalorder %s109, %s110
    %p119 = scmp.eq.s32.totalorder %s17, 0
    %p120 = por %p118, %p119
    %p121 = scmp.ne.s32.totalorder %s109, %s110
    %p122 = scmp.eq.s32.totalorder %s18, 7
    %p123 = por %p121, %p122
    %p125 = scmp.ne.s32.totalorder %s110, %s124
    %p126 = scmp.eq.s32.totalorder %s18, 0
    %p127 = por %p125, %p126
    %s129 = sadd.s32 %s128, 1
    %p132 = scmp.eq.s32.totalorder %s12, 7
    %p133 = scmp.ne.s32.totalorder %s128, %s130
    %p134 = scmp.eq.s32.totalorder %s12, 0
    %p135 = por %p133, %p134
    %p136 = scmp.ne.s32.totalorder %s128, %s130
    %p137 = scmp.eq.s32.totalorder %s17, 7
    %p138 = por %p136, %p137
    %p139 = scmp.ne.s32.totalorder %s130, %s131
    %p140 = scmp.eq.s32.totalorder %s17, 0
    %p141 = por %p139, %p140
    %p142 = scmp.ne.s32.totalorder %s130, %s131
    %p143 = scmp.eq.s32.totalorder %s18, 7
    %p144 = por %p142, %p143
    %p146 = scmp.ne.s32.totalorder %s131, %s145
    %p147 = scmp.eq.s32.totalorder %s18, 0
    %p148 = por %p146, %p147
    %s150 = sadd.s32 %s149, 1
    %p153 = scmp.eq.s32.totalorder %s12, 7
    %p154 = scmp.ne.s32.totalorder %s149, %s151
    %p155 = scmp.eq.s32.totalorder %s12, 0
    %p156 = por %p154, %p155
    %p157 = scmp.ne.s32.totalorder %s149, %s151
    %p158 = scmp.eq.s32.totalorder %s17, 7
    %p159 = por %p157, %p158
    %p160 = scmp.ne.s32.totalorder %s151, %s152
    %p161 = scmp.eq.s32.totalorder %s17, 0
    %p162 = por %p160, %p161
    %p163 = scmp.ne.s32.totalorder %s151, %s152
    %p164 = scmp.eq.s32.totalorder %s18, 7
    %p165 = por %p163, %p164
    %p167 = scmp.ne.s32.totalorder %s152, %s166
    %p168 = scmp.eq.s32.totalorder %s18, 0
    %p169 = por %p167, %p168
    %s170 = ssub.s32 %s19, %s31
    %p171 = scmp.eq.s32.totalorder %s170, 0
    %s173 = sadd.s32 %s172, 1
    %s174 = scalar_select %p171, %s172, %s173
    %p177 = pneg %p171
    %p178 = scmp.eq.s32.totalorder %s12, 7
    %p179 = por %p177, %p178
    %p180 = scmp.ne.s32.totalorder %s172, %s175
    %p181 = scmp.eq.s32.totalorder %s12, 0
    %p182 = por %p180, %p181
    %p183 = scmp.ne.s32.totalorder %s172, %s175
    %p184 = scmp.eq.s32.totalorder %s17, 7
    %p185 = por %p183, %p184
    %p186 = scmp.ne.s32.totalorder %s175, %s176
    %p187 = scmp.eq.s32.totalorder %s17, 0
    %p188 = por %p186, %p187
    %p189 = scmp.ne.s32.totalorder %s175, %s176
    %p190 = scmp.eq.s32.totalorder %s18, 7
    %p191 = por %p189, %p190
    %p193 = scmp.ne.s32.totalorder %s176, %s192
    %p194 = scmp.eq.s32.totalorder %s18, 0
    %p195 = por %p193, %p194
    %p196 = scmp.le.s32.totalorder 1, %s12
    %p197 = scmp.lt.s32.totalorder %s12, 9
    %p198 = pnand %p196, %p197
    %p199 = pneg %p198
    // Predicated region
    $region9: #{depthwise_conv2d_forward.1} parent=5 // pred_check
      _
    $region10: #{depthwise_conv2d_forward.1} parent=5 // pred_check_branch
      %201 = sbr.rel (%p198) target = $region12
    $region11: #{depthwise_conv2d_forward.1} parent=5 // pred_region
      %s202 = ssub.s32 %s12, 1
      // Predicated region
      $region13: #{depthwise_conv2d_forward.1} parent=11 // pred_check
        %p203 = pneg %p99
      $region14: #{depthwise_conv2d_forward.1} parent=11 // pred_check_branch
        %205 = sbr.rel (%p203) target = $region16
      $region15: #{depthwise_conv2d_forward.1} parent=11 // pred_region
        _
      $region16: #{depthwise_conv2d_forward.1} parent=11 // pred_fallthru
        _
      // Predicated region
      $region17: #{depthwise_conv2d_forward.1} parent=11 // pred_check
        %p206 = pneg %p120
      $region18: #{depthwise_conv2d_forward.1} parent=11 // pred_check_branch
        %208 = sbr.rel (%p206) target = $region20
      $region19: #{depthwise_conv2d_forward.1} parent=11 // pred_region
        _
      $region20: #{depthwise_conv2d_forward.1} parent=11 // pred_fallthru
        _
      // Predicated region
      $region21: #{depthwise_conv2d_forward.1} parent=11 // pred_check
        %p209 = pneg %p141
      $region22: #{depthwise_conv2d_forward.1} parent=11 // pred_check_branch
        %211 = sbr.rel (%p209) target = $region24
      $region23: #{depthwise_conv2d_forward.1} parent=11 // pred_region
        _
      $region24: #{depthwise_conv2d_forward.1} parent=11 // pred_fallthru
        _
      // Predicated region
      $region25: #{depthwise_conv2d_forward.1} parent=11 // pred_check
        %p212 = pneg %p162
      $region26: #{depthwise_conv2d_forward.1} parent=11 // pred_check_branch
        %214 = sbr.rel (%p212) target = $region28
      $region27: #{depthwise_conv2d_forward.1} parent=11 // pred_region
        _
      $region28: #{depthwise_conv2d_forward.1} parent=11 // pred_fallthru
        _
    $region12: #{depthwise_conv2d_forward.1} parent=5 // pred_fallthru
      _
    %p215 = scmp.lt.s32.totalorder %s12, 8
    // Predicated region
    $region29: #{depthwise_conv2d_forward.1} parent=5 // pred_check
      %p216 = pneg %p215
    $region30: #{depthwise_conv2d_forward.1} parent=5 // pred_check_branch
      %218 = sbr.rel (%p216) target = $region32
    $region31: #{depthwise_conv2d_forward.1} parent=5 // pred_region
      // Predicated region
      $region33: #{depthwise_conv2d_forward.1} parent=31 // pred_check
        %p219 = pneg %p46
      $region34: #{depthwise_conv2d_forward.1} parent=31 // pred_check_branch
        %221 = sbr.rel (%p219) target = $region36
      $region35: #{depthwise_conv2d_forward.1} parent=31 // pred_region
        %p222 = scmp.lt.s32.totalorder %s20, 3
        %s223 = scalar_select %p222, %s20, 3
        %p224 = scmp.lt.s32.totalorder %s19, 1
        %s225 = scalar_select %p224, %s19, 1
        %s226 = smul.addr %s225, 18
        %s227 = smul.addr %s223, 36
        %s228 = sadd.s32 %s226, %s227
        %s229 = smul.addr %s228, 8
        %s230 = scalar_lea.vmem %s0, %s229
      $region36: #{depthwise_conv2d_forward.1} parent=31 // pred_fallthru
        _
      // Predicated region
      $region37: #{depthwise_conv2d_forward.1} parent=31 // pred_check
        %p231 = pneg %p72
      $region38: #{depthwise_conv2d_forward.1} parent=31 // pred_check_branch
        %233 = sbr.rel (%p231) target = $region40
      $region39: #{depthwise_conv2d_forward.1} parent=31 // pred_region
        %p234 = scmp.lt.s32.totalorder %s20, 3
        %s235 = scalar_select %p234, %s20, 3
        %s236 = smul.addr %s235, 4
        %s237 = scalar_lea.vmem %s1, %s236
      $region40: #{depthwise_conv2d_forward.1} parent=31 // pred_fallthru
        _
    $region32: #{depthwise_conv2d_forward.1} parent=5 // pred_fallthru
      _
    %p238 = scmp.le.s32.totalorder 1, %s12
    %p239 = scmp.lt.s32.totalorder %s12, 9
    %p240 = pnand %p238, %p239
    %p241 = pneg %p240
    // Predicated region
    $region41: #{depthwise_conv2d_forward.1} parent=5 // pred_check
      _
    $region42: #{depthwise_conv2d_forward.1} parent=5 // pred_check_branch
      %243 = sbr.rel (%p240) target = $region44
    $region43: #{depthwise_conv2d_forward.1} parent=5 // pred_region
      %s244 = ssub.s32 %s12, 1
      %p245 = scmp.lt.s32.totalorder %s22, 3
      %s246 = scalar_select %p245, %s22, 3
      %p247 = scmp.lt.s32.totalorder %s21, 1
      %s248 = scalar_select %p247, %s21, 1
      %s249 = smul.addr %s248, 18
      %s250 = smul.addr %s246, 36
      %s251 = sadd.s32 %s249, %s250
      %s252 = smul.addr %s251, 8
      %s253 = scalar_lea.vmem %s0, %s252
      %p254 = pneg %p52
      %p255 = pneg %p49
      %p256 = scmp.lt.s32.totalorder %s22, 3
      %s257 = scalar_select %p256, %s22, 3
      %s258 = smul.addr %s257, 4
      %s259 = scalar_lea.vmem %s1, %s258
      %p260 = pneg %p78
      %p261 = pneg %p75
      %p262 = pneg %p99
      %p263 = pneg %p96
      %p264 = pneg %p120
      %p265 = pneg %p117
      %p266 = pneg %p141
      %p267 = pneg %p138
      %p268 = pneg %p162
      %p269 = pneg %p159
      %p270 = pneg %p188
      %p271 = pneg %p185
      %p272 = scmp.lt.s32.totalorder %s21, 1
      %s273 = scalar_select %p272, %s21, 1
      %s274 = smul.addr %s273, 8
      %s275 = smul.addr %s274, 8
      %s276 = scalar_lea.vmem %s6, %s275
      %p277 = scmp.lt.s32.totalorder %s22, 3
      %s278 = scalar_select %p277, %s22, 3
      %p279 = scmp.lt.s32.totalorder %s21, 1
      %s280 = scalar_select %p279, %s21, 1
      %s281 = smul.addr %s280, 18
      %s282 = smul.addr %s278, 36
      %s283 = sadd.s32 %s281, %s282
      %s284 = smul.addr %s283, 8
      %s285 = scalar_lea.vmem %s0, %s284
      %p286 = scmp.lt.s32.totalorder %s22, 3
      %s287 = scalar_select %p286, %s22, 3
      %s288 = smul.addr %s287, 4
      %s289 = scalar_lea.vmem %s1, %s288
      %p290 = scmp.lt.s32.totalorder %s21, 1
      %s291 = scalar_select %p290, %s21, 1
      %s292 = smul.addr %s291, 8
      %s293 = smul.addr %s292, 8
      %s294 = scalar_lea.vmem %s6, %s293
      %p296 = scmp.eq.s32.totalorder %s22, 0
      // Predicated region
      $region45: #{depthwise_conv2d_forward.1} parent=43 // pred_check
        %p297 = pneg %p296
      $region46: #{depthwise_conv2d_forward.1} parent=43 // pred_check_branch
        %299 = sbr.rel (%p297) target = $region48
      $region47: #{depthwise_conv2d_forward.1} parent=43 // pred_region
        %vm300 = vcmask 31744
        %301 = vst.msk [vmem:[#allocation2] sm:$0xff] %vm300, 0.0
        %302 = vst.msk [vmem:[#allocation2 + $0x8] sm:$0xff] %vm300, 0.0
        %303 = vst.msk [vmem:[#allocation2 + $0x10] sm:$0xff] %vm300, 0.0
        %304 = vst.msk [vmem:[#allocation2 + $0x18] sm:$0xff] %vm300, 0.0
        %305 = vst.msk [vmem:[#allocation2 + $0x20] sm:$0xff] %vm300, 0.0
        %306 = vst.msk [vmem:[#allocation2 + $0x28] sm:$0xff] %vm300, 0.0
        %307 = vst.msk [vmem:[#allocation2 + $0x30] sm:$0xff] %vm300, 0.0
        %308 = vst.msk [vmem:[#allocation2 + $0x38] sm:$0xff] %vm300, 0.0
      $region48: #{depthwise_conv2d_forward.1} parent=43 // pred_fallthru
        _
      %v309 = vld [vmem:[%s285] sm:$0xff]
      %v310 = vld [vmem:[%s285 + $0x10] sm:$0xff]
      %v311 = vld [vmem:[%s285 + $0x20] sm:$0xff]
      %v312 = vld [vmem:[%s285 + $0x30] sm:$0xff]
      %v313 = vld [vmem:[%s285 + $0x40] sm:$0xff]
      %v314 = vld [vmem:[%s285 + $0x50] sm:$0xff]
      %v315 = vld [vmem:[%s285 + $0x60] sm:$0xff]
      %v316 = vld [vmem:[%s285 + $0x70] sm:$0xff]
      %v317 = vld [vmem:[%s289] sm:$0x1]
      %v318 = vlaneseq
      %v319 = vshrl.u32 %v318, 7
      %v320 = vsub.s32 0, %v319
      %v321 = vrot.slane %v317, %v320
      %v322 = vmul.f32 %v309, %v321
      %v323 = vmul.f32 %v310, %v321
      %v324 = vmul.f32 %v311, %v321
      %v325 = vmul.f32 %v312, %v321
      %v326 = vmul.f32 %v313, %v321
      %v327 = vmul.f32 %v314, %v321
      %v328 = vmul.f32 %v315, %v321
      %v329 = vmul.f32 %v316, %v321
      %v330 = vld [vmem:[%s285 + $0x1] sm:$0xff]
      %v331 = vld [vmem:[%s285 + $0x11] sm:$0xff]
      %v332 = vld [vmem:[%s285 + $0x21] sm:$0xff]
      %v333 = vld [vmem:[%s285 + $0x31] sm:$0xff]
      %v334 = vld [vmem:[%s285 + $0x41] sm:$0xff]
      %v335 = vld [vmem:[%s285 + $0x51] sm:$0xff]
      %v336 = vld [vmem:[%s285 + $0x61] sm:$0xff]
      %v337 = vld [vmem:[%s285 + $0x71] sm:$0xff]
      %v338 = vld [vmem:[%s289 + $0x1] sm:$0x1]
      %v339 = vlaneseq
      %v340 = vshrl.u32 %v339, 7
      %v341 = vsub.s32 0, %v340
      %v342 = vrot.slane %v338, %v341
      %v343 = vmul.f32 %v330, %v342
      %v344 = vmul.f32 %v331, %v342
      %v345 = vmul.f32 %v332, %v342
      %v346 = vmul.f32 %v333, %v342
      %v347 = vmul.f32 %v334, %v342
      %v348 = vmul.f32 %v335, %v342
      %v349 = vmul.f32 %v336, %v342
      %v350 = vmul.f32 %v337, %v342
      %v351 = vadd.f32 %v322, %v343
      %v352 = vadd.f32 %v323, %v344
      %v353 = vadd.f32 %v324, %v345
      %v354 = vadd.f32 %v325, %v346
      %v355 = vadd.f32 %v326, %v347
      %v356 = vadd.f32 %v327, %v348
      %v357 = vadd.f32 %v328, %v349
      %v358 = vadd.f32 %v329, %v350
      %s359 = scalar_lea.vmem %s285, 16
      %v360 = vld [vmem:[%s359] sm:$0xff]
      %v361 = vld [vmem:[%s359 + $0x10] sm:$0xff]
      %v362 = vld [vmem:[%s359 + $0x20] sm:$0xff]
      %v363 = vld [vmem:[%s359 + $0x30] sm:$0xff]
      %v364 = vld [vmem:[%s359 + $0x40] sm:$0xff]
      %v365 = vld [vmem:[%s359 + $0x50] sm:$0xff]
      %v366 = vld [vmem:[%s359 + $0x60] sm:$0xff]
      %v367 = vld [vmem:[%s359 + $0x70] sm:$0xff]
      %v368 = vld [vmem:[%s289 + $0x2] sm:$0x1]
      %v369 = vlaneseq
      %v370 = vshrl.u32 %v369, 7
      %v371 = vsub.s32 0, %v370
      %v372 = vrot.slane %v368, %v371
      %v373 = vmul.f32 %v360, %v372
      %v374 = vmul.f32 %v361, %v372
      %v375 = vmul.f32 %v362, %v372
      %v376 = vmul.f32 %v363, %v372
      %v377 = vmul.f32 %v364, %v372
      %v378 = vmul.f32 %v365, %v372
      %v379 = vmul.f32 %v366, %v372
      %v380 = vmul.f32 %v367, %v372
      %v381 = vadd.f32 %v351, %v373
      %v382 = vadd.f32 %v352, %v374
      %v383 = vadd.f32 %v353, %v375
      %v384 = vadd.f32 %v354, %v376
      %v385 = vadd.f32 %v355, %v377
      %v386 = vadd.f32 %v356, %v378
      %v387 = vadd.f32 %v357, %v379
      %v388 = vadd.f32 %v358, %v380
      %v389 = vld [vmem:[%s359 + $0x1] sm:$0xff]
      %v390 = vld [vmem:[%s359 + $0x11] sm:$0xff]
      %v391 = vld [vmem:[%s359 + $0x21] sm:$0xff]
      %v392 = vld [vmem:[%s359 + $0x31] sm:$0xff]
      %v393 = vld [vmem:[%s359 + $0x41] sm:$0xff]
      %v394 = vld [vmem:[%s359 + $0x51] sm:$0xff]
      %v395 = vld [vmem:[%s359 + $0x61] sm:$0xff]
      %v396 = vld [vmem:[%s359 + $0x71] sm:$0xff]
      %v397 = vld [vmem:[%s289 + $0x3] sm:$0x1]
      %v398 = vlaneseq
      %v399 = vshrl.u32 %v398, 7
      %v400 = vsub.s32 0, %v399
      %v401 = vrot.slane %v397, %v400
      %v402 = vmul.f32 %v389, %v401
      %v403 = vmul.f32 %v390, %v401
      %v404 = vmul.f32 %v391, %v401
      %v405 = vmul.f32 %v392, %v401
      %v406 = vmul.f32 %v393, %v401
      %v407 = vmul.f32 %v394, %v401
      %v408 = vmul.f32 %v395, %v401
      %v409 = vmul.f32 %v396, %v401
      %v410 = vadd.f32 %v381, %v402
      %v411 = vadd.f32 %v382, %v403
      %v412 = vadd.f32 %v383, %v404
      %v413 = vadd.f32 %v384, %v405
      %v414 = vadd.f32 %v385, %v406
      %v415 = vadd.f32 %v386, %v407
      %v416 = vadd.f32 %v387, %v408
      %v417 = vadd.f32 %v388, %v409
      %v418 = vld [vmem:[#allocation2] sm:$0xff]
      %v419 = vld [vmem:[#allocation2 + $0x8] sm:$0xff]
      %v420 = vld [vmem:[#allocation2 + $0x10] sm:$0xff]
      %v421 = vld [vmem:[#allocation2 + $0x18] sm:$0xff]
      %v422 = vld [vmem:[#allocation2 + $0x20] sm:$0xff]
      %v423 = vld [vmem:[#allocation2 + $0x28] sm:$0xff]
      %v424 = vld [vmem:[#allocation2 + $0x30] sm:$0xff]
      %v425 = vld [vmem:[#allocation2 + $0x38] sm:$0xff]
      %v426 = vadd.f32 %v418, %v410
      %v427 = vadd.f32 %v419, %v411
      %v428 = vadd.f32 %v420, %v412
      %v429 = vadd.f32 %v421, %v413
      %v430 = vadd.f32 %v422, %v414
      %v431 = vadd.f32 %v423, %v415
      %v432 = vadd.f32 %v424, %v416
      %v433 = vadd.f32 %v425, %v417
      %vm434 = vcmask 31744
      %435 = vst.msk [vmem:[#allocation2] sm:$0xff] %vm434, %v426
      %436 = vst.msk [vmem:[#allocation2 + $0x8] sm:$0xff] %vm434, %v427
      %437 = vst.msk [vmem:[#allocation2 + $0x10] sm:$0xff] %vm434, %v428
      %438 = vst.msk [vmem:[#allocation2 + $0x18] sm:$0xff] %vm434, %v429
      %439 = vst.msk [vmem:[#allocation2 + $0x20] sm:$0xff] %vm434, %v430
      %440 = vst.msk [vmem:[#allocation2 + $0x28] sm:$0xff] %vm434, %v431
      %441 = vst.msk [vmem:[#allocation2 + $0x30] sm:$0xff] %vm434, %v432
      %442 = vst.msk [vmem:[#allocation2 + $0x38] sm:$0xff] %vm434, %v433
      %p443 = scmp.eq.s32.totalorder %s22, 3
      // Predicated region
      $region49: #{depthwise_conv2d_forward.1} parent=43 // pred_check
        %p444 = pneg %p443
      $region50: #{depthwise_conv2d_forward.1} parent=43 // pred_check_branch
        %446 = sbr.rel (%p444) target = $region52
      $region51: #{depthwise_conv2d_forward.1} parent=43 // pred_region
        %v447 = vld [vmem:[#allocation2] sm:$0xff]
        %v448 = vld [vmem:[#allocation2 + $0x8] sm:$0xff]
        %v449 = vld [vmem:[#allocation2 + $0x10] sm:$0xff]
        %v450 = vld [vmem:[#allocation2 + $0x18] sm:$0xff]
        %v451 = vld [vmem:[#allocation2 + $0x20] sm:$0xff]
        %v452 = vld [vmem:[#allocation2 + $0x28] sm:$0xff]
        %v453 = vld [vmem:[#allocation2 + $0x30] sm:$0xff]
        %v454 = vld [vmem:[#allocation2 + $0x38] sm:$0xff]
        %v455 = vld [vmem:[%s2] sm:$0x1]
        %v457 = vlaneseq
        %v458 = vshrl.u32 %v457, 7
        %v459 = vsub.s32 0, %v458
        %v460 = vrot.slane %v455, %v459
        %v462 = vmul.f32 %v447, %v460
        %v463 = vmul.f32 %v448, %v460
        %v464 = vmul.f32 %v449, %v460
        %v465 = vmul.f32 %v450, %v460
        %v466 = vmul.f32 %v451, %v460
        %v467 = vmul.f32 %v452, %v460
        %v468 = vmul.f32 %v453, %v460
        %v469 = vmul.f32 %v454, %v460
        %v470 = vld [vmem:[%s3] sm:$0x1]
        %v472 = vlaneseq
        %v473 = vshrl.u32 %v472, 7
        %v474 = vsub.s32 0, %v473
        %v475 = vrot.slane %v470, %v474
        %v477 = vadd.f32 %v462, %v475
        %v478 = vadd.f32 %v463, %v475
        %v479 = vadd.f32 %v464, %v475
        %v480 = vadd.f32 %v465, %v475
        %v481 = vadd.f32 %v466, %v475
        %v482 = vadd.f32 %v467, %v475
        %v483 = vadd.f32 %v468, %v475
        %v484 = vadd.f32 %v469, %v475
        %v485 = vpack.c.bf16 %v478, %v477
        %v486 = vpack.c.bf16 %v480, %v479
        %v487 = vpack.c.bf16 %v482, %v481
        %v488 = vpack.c.bf16 %v484, %v483
        %v489 = vld [vmem:[%s4] sm:$0x3]
        %v490 = vld [vmem:[%s5] sm:$0x1]
        %v492 = vlaneseq
        %v493 = vshrl.u32 %v492, 7
        %v494 = vsub.s32 0, %v493
        %v495 = vrot.slane %v490, %v494
        %v498 = vsel %vm434, %v485, 0
        %v501 = vsel %vm434, %v486, 0
        %v504 = vsel %vm434, %v487, 0
        %v507 = vsel %vm434, %v488, 0
        %vm509 = vcmask 1041408
        %v511 = vsel %vm509, %v489, 0
        %513 = vmatprep.subr.bf16.mxu0 0
        %514 = vmatpush1.bf16.msra.mxu0 %v511
        %515 = vmatprep.subr.bf16.mxu0 0
        %516 = vmatpush1.bf16.msra.mxu0 0
        %517 = vmatprep.subr.bf16.mxu0 0
        %518 = vmatpush1.bf16.msra.mxu0 0
        %519 = vmatprep.subr.bf16.mxu0 0
        %520 = vmatpush1.bf16.msra.mxu0 0
        %521 = vmatprep.subr.bf16.mxu0 0
        %522 = vmatpush1.bf16.msra.mxu0 0
        %523 = vmatprep.subr.bf16.mxu0 0
        %524 = vmatpush1.bf16.msra.mxu0 0
        %525 = vmatprep.subr.bf16.mxu0 0
        %526 = vmatpush1.bf16.msra.mxu0 0
        %527 = vmatprep.subr.bf16.mxu0 0
        %528 = vmatpush1.bf16.msra.mxu0 0
        %529 = vmatprep.subr.bf16.mxu0 0
        %530 = vmatpush1.bf16.msra.mxu0 0
        %531 = vmatprep.subr.bf16.mxu0 0
        %532 = vmatpush1.bf16.msra.mxu0 0
        %533 = vmatprep.subr.bf16.mxu0 0
        %534 = vmatpush1.bf16.msra.mxu0 0
        %535 = vmatprep.subr.bf16.mxu0 0
        %536 = vmatpush1.bf16.msra.mxu0 0
        %537 = vmatprep.subr.bf16.mxu0 0
        %538 = vmatpush1.bf16.msra.mxu0 0
        %539 = vmatprep.subr.bf16.mxu0 0
        %540 = vmatpush1.bf16.msra.mxu0 0
        %541 = vmatprep.subr.bf16.mxu0 0
        %542 = vmatpush1.bf16.msra.mxu0 0
        %543 = vmatprep.subr.bf16.mxu0 0
        %544 = vmatpush1.bf16.msra.mxu0 0
        %545 = vmatprep.mubr.bf16.mxu0 0
        %546 = vmatmul.mubr.bf16.gmra.mrb[0].mxu0 %v498
        %v547 = vpop.f32.mrb[0].mxu0
        %v548 = vadd.f32 %v495, %v547
        %v549 = vpop.f32.mrb[0].mxu0
        %v550 = vpop.f32.mrb[0].mxu0
        %v551 = vadd.f32 %v495, %v550
        %v552 = vpop.f32.mrb[0].mxu0
        %553 = vmatprep.mubr.bf16.mxu0 0
        %554 = vmatmul.mubr.bf16.gmra.mrb[0].mxu0 %v501
        %v555 = vpop.f32.mrb[0].mxu0
        %v556 = vadd.f32 %v495, %v555
        %v557 = vpop.f32.mrb[0].mxu0
        %v558 = vpop.f32.mrb[0].mxu0
        %v559 = vadd.f32 %v495, %v558
        %v560 = vpop.f32.mrb[0].mxu0
        %561 = vmatprep.mubr.bf16.mxu0 0
        %562 = vmatmul.mubr.bf16.gmra.mrb[0].mxu0 %v504
        %v563 = vpop.f32.mrb[0].mxu0
        %v564 = vadd.f32 %v495, %v563
        %v565 = vpop.f32.mrb[0].mxu0
        %v566 = vpop.f32.mrb[0].mxu0
        %v567 = vadd.f32 %v495, %v566
        %v568 = vpop.f32.mrb[0].mxu0
        %569 = vmatprep.mubr.bf16.mxu0 0
        %570 = vmatmul.mubr.bf16.gmra.mrb[0].mxu0 %v507
        %v571 = vpop.f32.mrb[0].mxu0
        %v572 = vadd.f32 %v495, %v571
        %v573 = vpop.f32.mrb[0].mxu0
        %v574 = vpop.f32.mrb[0].mxu0
        %v575 = vadd.f32 %v495, %v574
        %v576 = vpop.f32.mrb[0].mxu0
        %577 = vdwg.mxu0
        %578 = vst [vmem:[%s294] sm:$0xff] %v548
        %579 = vst [vmem:[%s294 + $0x8] sm:$0xff] %v551
        %580 = vst [vmem:[%s294 + $0x10] sm:$0xff] %v556
        %581 = vst [vmem:[%s294 + $0x18] sm:$0xff] %v559
        %582 = vst [vmem:[%s294 + $0x20] sm:$0xff] %v564
        %583 = vst [vmem:[%s294 + $0x28] sm:$0xff] %v567
        %584 = vst [vmem:[%s294 + $0x30] sm:$0xff] %v572
        %585 = vst [vmem:[%s294 + $0x38] sm:$0xff] %v575
      $region52: #{depthwise_conv2d_forward.1} parent=43 // pred_fallthru
        _
      %p586 = scmp.lt.s32.totalorder %s21, 1
      %s587 = scalar_select %p586, %s21, 1
      %s588 = smul.addr %s587, 8
      %s589 = smul.addr %s588, 8
      %s590 = scalar_lea.vmem %s6, %s589
      // Predicated region
      $region53: #{depthwise_conv2d_forward.1} parent=43 // pred_check
        %p591 = pneg %p185
      $region54: #{depthwise_conv2d_forward.1} parent=43 // pred_check_branch
        %593 = sbr.rel (%p591) target = $region56
      $region55: #{depthwise_conv2d_forward.1} parent=43 // pred_region
        _
      $region56: #{depthwise_conv2d_forward.1} parent=43 // pred_fallthru
        _
    $region44: #{depthwise_conv2d_forward.1} parent=5 // pred_fallthru
      _
    %p594 = scmp.le.s32.totalorder 2, %s12
    // Predicated region
    $region57: #{depthwise_conv2d_forward.1} parent=5 // pred_check
      %p595 = pneg %p594
    $region58: #{depthwise_conv2d_forward.1} parent=5 // pred_check_branch
      %597 = sbr.rel (%p595) target = $region60
    $region59: #{depthwise_conv2d_forward.1} parent=5 // pred_region
      %s598 = ssub.s32 %s12, 2
      // Predicated region
      $region61: #{depthwise_conv2d_forward.1} parent=59 // pred_check
        %p599 = pneg %p191
      $region62: #{depthwise_conv2d_forward.1} parent=59 // pred_check_branch
        %601 = sbr.rel (%p599) target = $region64
      $region63: #{depthwise_conv2d_forward.1} parent=59 // pred_region
        %p602 = scmp.lt.s32.totalorder %s23, 1
        %s603 = scalar_select %p602, %s23, 1
        %s604 = smul.addr %s603, 8
        %s605 = smul.addr %s604, 8
        %s606 = scalar_lea.vmem %s6, %s605
      $region64: #{depthwise_conv2d_forward.1} parent=59 // pred_fallthru
        _
    $region60: #{depthwise_conv2d_forward.1} parent=5 // pred_fallthru
      _
  $region6: #{depthwise_conv2d_forward.1} parent=0 // loop_footer
    %s16 = sadd.s32 1, %s12
  $region7: #{depthwise_conv2d_forward.1} parent=0 // loop_footer_branch
    %11 = sbr.rel target = $region3
  $region8: #{depthwise_conv2d_forward.1} parent=0 // loop_exit
    _

</llo_original>
